<compile_context>
chip_gen: v6e
topology: v6e:2x2x1
jax: 0.10.0
libtpu: 0.0.40
codegen_flags: <defaults>
</compile_context>

<pallas_src>
import jax
import jax.numpy as jnp
from jax.experimental import pallas as pl
from jax.experimental.pallas import tpu as pltpu

LEAKY_SLOPE = 0.01   # nn.LeakyReLU default negative_slope
K_IN = 1000          # backbone feature dim
HIDDEN = 256         # linear1 output dim
N_PAD = 128          # padded lane-dense logit dim (supports n_classes <= 128)
TM_TARGET = 512      # batch tile target (sweet spot per mem-bound tile sweep)


def _round_up(x, m):
    return (x + m - 1) // m * m


def _head_kernel(am_ref, w1_ref, b1_ref, w2_ref, b2_ref, o_ref):
    # Cast activations to bf16 in-kernel (no wrapper copy); MXU accumulates f32.
    a = am_ref[...].astype(jnp.bfloat16)
    # linear1: [tm,1000]bf16 @ [1000,256]bf16 -> f32 (Mosaic masks the ragged K)
    h = jnp.dot(a, w1_ref[...], preferred_element_type=jnp.float32)
    h = h + b1_ref[...]
    # LeakyReLU
    h = jnp.where(h >= 0.0, h, LEAKY_SLOPE * h)
    # Dropout(p=0.7): identity at inference.
    # TODO(synk): no training-mode dropout path (RNG mask + 1/(1-p) scaling).
    # linear2: [tm,256]bf16 @ [256,128]bf16 -> f32
    out = jnp.dot(h.astype(jnp.bfloat16), w2_ref[...],
                  preferred_element_type=jnp.float32)
    out = out + b2_ref[...]
    o_ref[...] = out.astype(o_ref.dtype)


def prepare_head_params(w1, b1, w2, b2):
    """One-time parameter prep (hoisted out of the per-call path).

    w1: [1000,256], b1: [1,256], w2: [256,C], b2: [1,C]
    (PyTorch weights stored pre-transposed as [in_features, out_features]).
    """
    n_classes = w2.shape[1]
    assert n_classes <= N_PAD
    w1_bf = w1.astype(jnp.bfloat16)                       # [1000, 256]
    b1_f = b1.reshape(1, HIDDEN).astype(jnp.float32)       # [1, 256]
    w2_bf = jnp.pad(w2.astype(jnp.bfloat16),
                    ((0, 0), (0, N_PAD - n_classes)))      # [256, 128]
    b2_f = jnp.pad(b2.reshape(1, n_classes).astype(jnp.float32),
                   ((0, 0), (0, N_PAD - n_classes)))       # [1, 128]
    return w1_bf, b1_f, w2_bf, b2_f, n_classes


def classifier_head(am, w1_bf, b1_f, w2_bf, b2_f, n_classes):
    """Fused Linear(1000,256) -> LeakyReLU -> Dropout(eval) -> Linear(256,C)."""
    B, K = am.shape
    assert K == K_IN

    # Batch tile: target 512, capped so large batches give >= 2 grid steps
    # (keeps both v7x TensorCores busy); always a multiple of 16.
    tm = min(TM_TARGET, _round_up(pl.cdiv(B, 2), 16))
    tm = max(tm, 16)
    grid = (pl.cdiv(B, tm),)

    flops = 2 * B * (K_IN * HIDDEN + HIDDEN * N_PAD)
    bytes_accessed = (B * K_IN * 4 + B * N_PAD * 4
                      + (K_IN * HIDDEN + HIDDEN * N_PAD) * 2
                      + (HIDDEN + N_PAD) * 4)

    out_p = pl.pallas_call(
        _head_kernel,
        out_shape=jax.ShapeDtypeStruct((B, N_PAD), jnp.float32),
        grid_spec=pltpu.PrefetchScalarGridSpec(
            num_scalar_prefetch=0,
            grid=grid,
            in_specs=[
                # Activation stream: tiled over batch, full (ragged) K dim,
                # double-buffered by BlockSpec pipelining.
                pl.BlockSpec((tm, K_IN), lambda i: (i, 0)),
                # Weights / biases: VMEM-resident (same block every step).
                pl.BlockSpec((K_IN, HIDDEN), lambda i: (0, 0)),
                pl.BlockSpec((1, HIDDEN), lambda i: (0, 0)),
                pl.BlockSpec((HIDDEN, N_PAD), lambda i: (0, 0)),
                pl.BlockSpec((1, N_PAD), lambda i: (0, 0)),
            ],
            out_specs=pl.BlockSpec((tm, N_PAD), lambda i: (i, 0)),
        ),
        compiler_params=pltpu.CompilerParams(
            # Batch axis is independent -> shard across both v7x TensorCores;
            # harmless no-op on v5e/v6e (single TC).
            dimension_semantics=("parallel",)),
        cost_estimate=pl.CostEstimate(
            flops=flops, transcendentals=0, bytes_accessed=bytes_accessed),
    )(am, w1_bf, b1_f, w2_bf, b2_f)

    # Strip logit padding (batch is unpadded now).
    return out_p[:, :n_classes]


def init_params(key, n_classes):
    """Deterministic init mirroring nn.Linear defaults: U(-1/sqrt(fan_in), +)."""
    k1, k2, k3, k4 = jax.random.split(key, 4)
    lim1 = 1.0 / jnp.sqrt(1000.0)
    lim2 = 1.0 / jnp.sqrt(256.0)
    # Stored as [in_features, out_features] (PyTorch weight transposed).
    w1 = jax.random.uniform(k1, (K_IN, HIDDEN), jnp.float32, -lim1, lim1)
    b1 = jax.random.uniform(k2, (1, HIDDEN), jnp.float32, -lim1, lim1)
    w2 = jax.random.uniform(k3, (HIDDEN, n_classes), jnp.float32, -lim2, lim2)
    b2 = jax.random.uniform(k4, (1, n_classes), jnp.float32, -lim2, lim2)
    return w1, b1, w2, b2


def _reference(am, w1, b1, w2, b2):
    """Pure-JAX reference emulating bf16-input / f32-accumulate matmuls."""
    h = jnp.dot(am.astype(jnp.bfloat16), w1.astype(jnp.bfloat16),
                preferred_element_type=jnp.float32) + b1
    h = jnp.where(h >= 0.0, h, LEAKY_SLOPE * h)
    return jnp.dot(h.astype(jnp.bfloat16), w2.astype(jnp.bfloat16),
                   preferred_element_type=jnp.float32) + b2


if __name__ == "__main__":
    n_classes = 10
    key = jax.random.PRNGKey(0)
    k_feat, k_params, k_feat2 = jax.random.split(key, 3)

    w1, b1, w2, b2 = init_params(k_params, n_classes)
    # One-time param prep (hoisted out of the forward path).
    w1_bf, b1_f, w2_bf, b2_f, nc = prepare_head_params(w1, b1, w2, b2)

    # --- case 1: tiny batch (B=2) -> single partial block --------------------
    batch = 2
    am = jax.random.normal(k_feat, (batch, K_IN), dtype=jnp.float32)
    out = classifier_head(am, w1_bf, b1_f, w2_bf, b2_f, nc)
    out = jax.block_until_ready(out)
    assert out.shape == (batch, n_classes)

    ref = _reference(am, w1, b1, w2, b2)
    assert jnp.allclose(out, ref, atol=5e-3, rtol=5e-3), (
        float(jnp.max(jnp.abs(out - ref))))

    # Sanity vs the full-f32 reference (looser tolerance for bf16 rounding).
    ref32 = am @ w1 + b1
    ref32 = jnp.where(ref32 >= 0.0, ref32, LEAKY_SLOPE * ref32)
    ref32 = ref32 @ w2 + b2
    assert jnp.allclose(out, ref32, atol=5e-2, rtol=5e-2), (
        float(jnp.max(jnp.abs(out - ref32))))

    # --- case 2: multi-block grid with a partial trailing block --------------
    batch2 = 300  # tm=160 -> grid=(2,), last block masks 20 OOB rows
    am2 = jax.random.normal(k_feat2, (batch2, K_IN), dtype=jnp.float32)
    out2 = classifier_head(am2, w1_bf, b1_f, w2_bf, b2_f, nc)
    out2 = jax.block_until_ready(out2)
    assert out2.shape == (batch2, n_classes)
    ref2 = _reference(am2, w1, b1, w2, b2)
    assert jnp.allclose(out2, ref2, atol=5e-3, rtol=5e-3), (
        float(jnp.max(jnp.abs(out2 - ref2))))

    print("KERNEL_OK")
</pallas_src>

<mosaic_0001>
module attributes {stable_mosaic.version = 11 : i64} {
  func.func @_head_kernel(%arg0: i32, %arg1: memref<16x1000xf32, #tpu.memory_space<vmem>>, %arg2: memref<1000x256xbf16, #tpu.memory_space<vmem>>, %arg3: memref<1x256xf32, #tpu.memory_space<vmem>>, %arg4: memref<256x128xbf16, #tpu.memory_space<vmem>>, %arg5: memref<1x128xf32, #tpu.memory_space<vmem>>, %arg6: memref<16x128xf32, #tpu.memory_space<vmem>>) attributes {dimension_semantics = [#tpu.dimension_semantics<parallel>], iteration_bounds = array<i64: 1>, scalar_prefetch = 0 : i64, scratch_operands = 0 : i64, tpu.core_type = #tpu.core_type<tc>, window_params = [{transform_indices = @transform_0, window_bounds = array<i64: 16, 1000>}, {pipeline_mode = #tpu.pipeline_mode<synchronous>, transform_indices = @transform_1, window_bounds = array<i64: 1000, 256>}, {pipeline_mode = #tpu.pipeline_mode<synchronous>, transform_indices = @transform_2, window_bounds = array<i64: 1, 256>}, {pipeline_mode = #tpu.pipeline_mode<synchronous>, transform_indices = @transform_3, window_bounds = array<i64: 256, 128>}, {pipeline_mode = #tpu.pipeline_mode<synchronous>, transform_indices = @transform_4, window_bounds = array<i64: 1, 128>}, {transform_indices = @transform_5, window_bounds = array<i64: 16, 128>}]} {
    %c0 = arith.constant 0 : index
    %c0_0 = arith.constant 0 : index
    %0 = vector.load %arg1[%c0, %c0_0] : memref<16x1000xf32, #tpu.memory_space<vmem>>, vector<16x1000xf32>
    %1 = arith.truncf %0 : vector<16x1000xf32> to vector<16x1000xbf16>
    %c0_1 = arith.constant 0 : index
    %c0_2 = arith.constant 0 : index
    %2 = vector.load %arg2[%c0_1, %c0_2] : memref<1000x256xbf16, #tpu.memory_space<vmem>>, vector<1000x256xbf16>
    %cst = arith.constant dense<0.000000e+00> : vector<16x256xf32>
    %3 = tpu.matmul %1, %2, %cst {dimension_numbers = #tpu.dot_dimension_numbers<[1], [0], [0], [1], [0, 0, 1, 1], [], []>} : vector<16x1000xbf16>, vector<1000x256xbf16>, vector<16x256xf32> -> vector<16x256xf32>
    %c0_3 = arith.constant 0 : index
    %c0_4 = arith.constant 0 : index
    %4 = vector.load %arg3[%c0_3, %c0_4] : memref<1x256xf32, #tpu.memory_space<vmem>>, vector<1x256xf32>
    %5 = vector.broadcast %4 : vector<1x256xf32> to vector<16x256xf32>
    %6 = arith.addf %3, %5 : vector<16x256xf32>
    %cst_5 = arith.constant 0.000000e+00 : f32
    %7 = vector.broadcast %cst_5 : f32 to vector<16x256xf32>
    %8 = arith.cmpf oge, %6, %7 : vector<16x256xf32>
    %cst_6 = arith.constant 0.00999999977 : f32
    %9 = vector.broadcast %cst_6 : f32 to vector<16x256xf32>
    %10 = arith.mulf %9, %6 : vector<16x256xf32>
    %11 = arith.select %8, %6, %10 : vector<16x256xi1>, vector<16x256xf32>
    %12 = arith.truncf %11 : vector<16x256xf32> to vector<16x256xbf16>
    %c0_7 = arith.constant 0 : index
    %c0_8 = arith.constant 0 : index
    %13 = vector.load %arg4[%c0_7, %c0_8] : memref<256x128xbf16, #tpu.memory_space<vmem>>, vector<256x128xbf16>
    %cst_9 = arith.constant dense<0.000000e+00> : vector<16x128xf32>
    %14 = tpu.matmul %12, %13, %cst_9 {dimension_numbers = #tpu.dot_dimension_numbers<[1], [0], [0], [1], [0, 0, 1, 1], [], []>} : vector<16x256xbf16>, vector<256x128xbf16>, vector<16x128xf32> -> vector<16x128xf32>
    %c0_10 = arith.constant 0 : index
    %c0_11 = arith.constant 0 : index
    %15 = vector.load %arg5[%c0_10, %c0_11] : memref<1x128xf32, #tpu.memory_space<vmem>>, vector<1x128xf32>
    %16 = vector.broadcast %15 : vector<1x128xf32> to vector<16x128xf32>
    %17 = arith.addf %14, %16 : vector<16x128xf32>
    %c0_12 = arith.constant 0 : index
    %c0_13 = arith.constant 0 : index
    %18 = vector.load %arg6[%c0_12, %c0_13] : memref<16x128xf32, #tpu.memory_space<vmem>>, vector<16x128xf32>
    tpu.vector_store %arg6[%c0_12, %c0_13], %17 {strides = array<i32>} : memref<16x128xf32, #tpu.memory_space<vmem>>, vector<16x128xf32>,
    return
  }
  func.func @transform_0(%arg0: i32) -> (i32, i32) {
    %c0_i32 = arith.constant 0 : i32
    %c0_i32_0 = arith.constant 0 : i32
    return %arg0, %c0_i32 : i32, i32
  }
  func.func @transform_1(%arg0: i32) -> (i32, i32) {
    %c0_i32 = arith.constant 0 : i32
    %c0_i32_0 = arith.constant 0 : i32
    %c0_i32_1 = arith.constant 0 : i32
    return %c0_i32, %c0_i32_0 : i32, i32
  }
  func.func @transform_2(%arg0: i32) -> (i32, i32) {
    %c0_i32 = arith.constant 0 : i32
    %c0_i32_0 = arith.constant 0 : i32
    %c0_i32_1 = arith.constant 0 : i32
    return %c0_i32, %c0_i32_0 : i32, i32
  }
  func.func @transform_3(%arg0: i32) -> (i32, i32) {
    %c0_i32 = arith.constant 0 : i32
    %c0_i32_0 = arith.constant 0 : i32
    %c0_i32_1 = arith.constant 0 : i32
    return %c0_i32, %c0_i32_0 : i32, i32
  }
  func.func @transform_4(%arg0: i32) -> (i32, i32) {
    %c0_i32 = arith.constant 0 : i32
    %c0_i32_0 = arith.constant 0 : i32
    %c0_i32_1 = arith.constant 0 : i32
    return %c0_i32, %c0_i32_0 : i32, i32
  }
  func.func @transform_5(%arg0: i32) -> (i32, i32) {
    %c0_i32 = arith.constant 0 : i32
    %c0_i32_0 = arith.constant 0 : i32
    return %arg0, %c0_i32 : i32, i32
  }
}

</mosaic_0001>

<llo_original>
// kernel: tpu_custom_call.1
$region0: #{tpu_custom_call.1}
  #allocation0 [shape = 'u32[]', space=smem, size = 0x4, offset = 0x4, fixed_abs, tag = 'smem constant byte address 0x4 - core index']
  #allocation1 [shape = 'u32[144,128]{1,0:T(1,128)}', space=vmem, size = 0x12000, scoped, tag = 'internal scratch']
  %s0 = inlined_call_operand.hbm [shape: f32[2,1000], index: 0, kind: input, shape index: {}]
  %s1 = inlined_call_operand.hbm [shape: bf16[1000,256], index: 1, kind: input, shape index: {}]
  %s2 = inlined_call_operand.vmem [shape: f32[1,256], index: 2, kind: input, shape index: {}]
  %s3 = inlined_call_operand.hbm [shape: bf16[256,128], index: 3, kind: input, shape index: {}]
  %s4 = inlined_call_operand.vmem [shape: f32[1,128], index: 4, kind: input, shape index: {}]
  %s5 = inlined_call_operand.hbm [shape: f32[2,128], index: 5, kind: output, shape index: {}]
  %s6 = sld [smem:[#allocation0]]
  $region42: #{tpu_custom_call.1} parent=0
    _
  %s8 = ssub.s32 1, %s6
  %s9 = scalar_select 0, %s8, %s6
  $region1: #{tpu_custom_call.1} parent=0
    #allocation2 [shape = 'u8[65536]{0}', space=vmem, size = 0x10000, scoped, tag = 'input window, operand 0, single buffered']
    #allocation3 [shape = 's32[1]{0}', space=sflag, size = 0x4, scoped, tag = 'scoped memory for tpu_custom_call.1']
    #allocation4 [shape = 's32[1]{0}', space=sflag, size = 0x4, scoped, tag = 'scoped memory for tpu_custom_call.1']
    #allocation5 [shape = 'u8[512000]{0}', space=vmem, size = 0x7d000, scoped, tag = 'input window, operand 1, single buffered']
    #allocation6 [shape = 's32[1]{0}', space=sflag, size = 0x4, scoped, tag = 'scoped memory for tpu_custom_call.1']
    #allocation7 [shape = 'u8[65536]{0}', space=vmem, size = 0x10000, scoped, tag = 'input window, operand 3, single buffered']
    #allocation8 [shape = 'u8[8192]{0}', space=vmem, size = 0x2000, scoped, tag = 'output window, operand 0, single buffered']
    %10 = vsyncpa [#allocation3], 0
    %11 = vsyncpa [#allocation6], 0
    %12 = vsyncpa [#allocation4], 0
    // Predicated region
    $region2: #{tpu_custom_call.1} parent=1 // pred_check
      _
    $region3: #{tpu_custom_call.1} parent=1 // pred_check_branch
      %14 = sbr.rel (0) target = $region5
    $region4: #{tpu_custom_call.1} parent=1 // pred_region
      %s16 = ssub.s32 2048, 256
      %17 = vsyncadd [#allocation3], %s16
      %s18 = sshll.u32 [#allocation2], 4
      %s19 = int_to_ptr.vmem [resolvable:$true] %s18
      %24 = dma.hbm_to_vmem [thread:$0]  %s0, 256, %s19, [#allocation3], 256, 256, 16
    $region5: #{tpu_custom_call.1} parent=1 // pred_fallthru
      _
    // Predicated region
    $region6: #{tpu_custom_call.1} parent=1 // pred_check
      _
    $region7: #{tpu_custom_call.1} parent=1 // pred_check_branch
      %26 = sbr.rel (0) target = $region9
    $region8: #{tpu_custom_call.1} parent=1 // pred_region
      %s28 = ssub.s32 16000, 16000
      %29 = vsyncadd [#allocation6], %s28
      %s30 = sshll.u32 [#allocation5], 4
      %s31 = int_to_ptr.vmem [resolvable:$true] %s30
      %36 = dma.hbm_to_vmem [thread:$0]  %s1, 16000, %s31, [#allocation6], 128, 128, 8
    $region9: #{tpu_custom_call.1} parent=1 // pred_fallthru
      _
    // Predicated region
    $region10: #{tpu_custom_call.1} parent=1 // pred_check
      _
    $region11: #{tpu_custom_call.1} parent=1 // pred_check_branch
      %38 = sbr.rel (0) target = $region13
    $region12: #{tpu_custom_call.1} parent=1 // pred_region
      _
    $region13: #{tpu_custom_call.1} parent=1 // pred_fallthru
      _
    // Predicated region
    $region14: #{tpu_custom_call.1} parent=1 // pred_check
      _
    $region15: #{tpu_custom_call.1} parent=1 // pred_check_branch
      %40 = sbr.rel (0) target = $region17
    $region16: #{tpu_custom_call.1} parent=1 // pred_region
      %s42 = ssub.s32 2048, 2048
      %43 = vsyncadd [#allocation6], %s42
      %s44 = sshll.u32 [#allocation7], 4
      %s45 = int_to_ptr.vmem [resolvable:$true] %s44
      %50 = dma.hbm_to_vmem [thread:$0]  %s3, 2048, %s45, [#allocation6], 64, 64, 4
    $region17: #{tpu_custom_call.1} parent=1 // pred_fallthru
      _
    // Predicated region
    $region18: #{tpu_custom_call.1} parent=1 // pred_check
      _
    $region19: #{tpu_custom_call.1} parent=1 // pred_check_branch
      %52 = sbr.rel (0) target = $region21
    $region20: #{tpu_custom_call.1} parent=1 // pred_region
      _
    $region21: #{tpu_custom_call.1} parent=1 // pred_fallthru
      _
    // Predicated region
    $region22: #{tpu_custom_call.1} parent=1 // pred_check
      _
    $region23: #{tpu_custom_call.1} parent=1 // pred_check_branch
      %54 = sbr.rel (0) target = $region25
    $region24: #{tpu_custom_call.1} parent=1 // pred_region
      %55 = dma.done [#allocation3], 2048
    $region25: #{tpu_custom_call.1} parent=1 // pred_fallthru
      _
    // Predicated region
    $region26: #{tpu_custom_call.1} parent=1 // pred_check
      _
    $region27: #{tpu_custom_call.1} parent=1 // pred_check_branch
      %57 = sbr.rel (0) target = $region29
    $region28: #{tpu_custom_call.1} parent=1 // pred_region
      %58 = dma.done [#allocation6], 16000
    $region29: #{tpu_custom_call.1} parent=1 // pred_fallthru
      _
    // Predicated region
    $region30: #{tpu_custom_call.1} parent=1 // pred_check
      _
    $region31: #{tpu_custom_call.1} parent=1 // pred_check_branch
      %60 = sbr.rel (0) target = $region33
    $region32: #{tpu_custom_call.1} parent=1 // pred_region
      %61 = dma.done [#allocation6], 2048
    $region33: #{tpu_custom_call.1} parent=1 // pred_fallthru
      _
    %v63 = vld [vmem:[#allocation2] sm:$0xff]
    %v64 = vld [vmem:[#allocation2 + $0x8] sm:$0xff]
    %v65 = vld [vmem:[#allocation2 + $0x10] sm:$0xff]
    %v66 = vld [vmem:[#allocation2 + $0x18] sm:$0xff]
    %v67 = vld [vmem:[#allocation2 + $0x20] sm:$0xff]
    %v68 = vld [vmem:[#allocation2 + $0x28] sm:$0xff]
    %v69 = vld [vmem:[#allocation2 + $0x30] sm:$0xff]
    %v70 = vld [vmem:[#allocation2 + $0x38] sm:$0xff]
    %v71 = vld [vmem:[#allocation2 + $0x40] sm:$0xff]
    %v72 = vld [vmem:[#allocation2 + $0x48] sm:$0xff]
    %v73 = vld [vmem:[#allocation2 + $0x50] sm:$0xff]
    %v74 = vld [vmem:[#allocation2 + $0x58] sm:$0xff]
    %v75 = vld [vmem:[#allocation2 + $0x60] sm:$0xff]
    %v76 = vld [vmem:[#allocation2 + $0x68] sm:$0xff]
    %v77 = vld [vmem:[#allocation2 + $0x70] sm:$0xff]
    %v78 = vld [vmem:[#allocation2 + $0x78] sm:$0xff]
    %v95 = vcombine.low %v63, %v65
    %v96 = vcombine.high %v63, %v65
    %v97 = vcombine.low %v67, %v69
    %v98 = vcombine.high %v67, %v69
    %v100 = vunpack.c.l.s4 1983009808
    %v101 = vunpack.c.0.s8 %v100
    %v102 = vlaneseq
    %v103 = vshrl.u32 %v102, 7
    %v104 = vsub.s32 %v101, %v103
    %v105 = vrot.slane %v95, %v104
    %v107 = vunpack.c.l.s4 1983009808
    %v108 = vunpack.c.0.s8 %v107
    %v109 = vlaneseq
    %v110 = vshrl.u32 %v109, 7
    %v111 = vsub.s32 %v108, %v110
    %v112 = vrot.slane %v96, %v111
    %v114 = vunpack.c.l.s4 1983009808
    %v115 = vunpack.c.0.s8 %v114
    %v116 = vlaneseq
    %v117 = vshrl.u32 %v116, 7
    %v118 = vsub.s32 %v115, %v117
    %v119 = vrot.slane %v97, %v118
    %v121 = vunpack.c.l.s4 1983009808
    %v122 = vunpack.c.0.s8 %v121
    %v123 = vlaneseq
    %v124 = vshrl.u32 %v123, 7
    %v125 = vsub.s32 %v122, %v124
    %v126 = vrot.slane %v98, %v125
    %v127 = vcombine.low %v105, %v119
    %v128 = vcombine.high %v105, %v119
    %v129 = vcombine.low %v112, %v126
    %v130 = vcombine.high %v112, %v126
    %v131 = vcombine.low %v64, %v66
    %v132 = vcombine.high %v64, %v66
    %v133 = vcombine.low %v68, %v70
    %v134 = vcombine.high %v68, %v70
    %v136 = vunpack.c.l.s4 1983009808
    %v137 = vunpack.c.0.s8 %v136
    %v138 = vlaneseq
    %v139 = vshrl.u32 %v138, 7
    %v140 = vsub.s32 %v137, %v139
    %v141 = vrot.slane %v131, %v140
    %v143 = vunpack.c.l.s4 1983009808
    %v144 = vunpack.c.0.s8 %v143
    %v145 = vlaneseq
    %v146 = vshrl.u32 %v145, 7
    %v147 = vsub.s32 %v144, %v146
    %v148 = vrot.slane %v132, %v147
    %v150 = vunpack.c.l.s4 1983009808
    %v151 = vunpack.c.0.s8 %v150
    %v152 = vlaneseq
    %v153 = vshrl.u32 %v152, 7
    %v154 = vsub.s32 %v151, %v153
    %v155 = vrot.slane %v133, %v154
    %v157 = vunpack.c.l.s4 1983009808
    %v158 = vunpack.c.0.s8 %v157
    %v159 = vlaneseq
    %v160 = vshrl.u32 %v159, 7
    %v161 = vsub.s32 %v158, %v160
    %v162 = vrot.slane %v134, %v161
    %v163 = vcombine.low %v141, %v155
    %v164 = vcombine.high %v141, %v155
    %v165 = vcombine.low %v148, %v162
    %v166 = vcombine.high %v148, %v162
    %v167 = vcombine.low %v71, %v73
    %v168 = vcombine.high %v71, %v73
    %v169 = vcombine.low %v75, %v77
    %v170 = vcombine.high %v75, %v77
    %v172 = vunpack.c.l.s4 1983009808
    %v173 = vunpack.c.0.s8 %v172
    %v174 = vlaneseq
    %v175 = vshrl.u32 %v174, 7
    %v176 = vsub.s32 %v173, %v175
    %v177 = vrot.slane %v167, %v176
    %v179 = vunpack.c.l.s4 1983009808
    %v180 = vunpack.c.0.s8 %v179
    %v181 = vlaneseq
    %v182 = vshrl.u32 %v181, 7
    %v183 = vsub.s32 %v180, %v182
    %v184 = vrot.slane %v168, %v183
    %v186 = vunpack.c.l.s4 1983009808
    %v187 = vunpack.c.0.s8 %v186
    %v188 = vlaneseq
    %v189 = vshrl.u32 %v188, 7
    %v190 = vsub.s32 %v187, %v189
    %v191 = vrot.slane %v169, %v190
    %v193 = vunpack.c.l.s4 1983009808
    %v194 = vunpack.c.0.s8 %v193
    %v195 = vlaneseq
    %v196 = vshrl.u32 %v195, 7
    %v197 = vsub.s32 %v194, %v196
    %v198 = vrot.slane %v170, %v197
    %v199 = vcombine.low %v177, %v191
    %v200 = vcombine.high %v177, %v191
    %v201 = vcombine.low %v184, %v198
    %v202 = vcombine.high %v184, %v198
    %v203 = vcombine.low %v72, %v74
    %v204 = vcombine.high %v72, %v74
    %v205 = vcombine.low %v76, %v78
    %v206 = vcombine.high %v76, %v78
    %v208 = vunpack.c.l.s4 1983009808
    %v209 = vunpack.c.0.s8 %v208
    %v210 = vlaneseq
    %v211 = vshrl.u32 %v210, 7
    %v212 = vsub.s32 %v209, %v211
    %v213 = vrot.slane %v203, %v212
    %v215 = vunpack.c.l.s4 1983009808
    %v216 = vunpack.c.0.s8 %v215
    %v217 = vlaneseq
    %v218 = vshrl.u32 %v217, 7
    %v219 = vsub.s32 %v216, %v218
    %v220 = vrot.slane %v204, %v219
    %v222 = vunpack.c.l.s4 1983009808
    %v223 = vunpack.c.0.s8 %v222
    %v224 = vlaneseq
    %v225 = vshrl.u32 %v224, 7
    %v226 = vsub.s32 %v223, %v225
    %v227 = vrot.slane %v205, %v226
    %v229 = vunpack.c.l.s4 1983009808
    %v230 = vunpack.c.0.s8 %v229
    %v231 = vlaneseq
    %v232 = vshrl.u32 %v231, 7
    %v233 = vsub.s32 %v230, %v232
    %v234 = vrot.slane %v206, %v233
    %v235 = vcombine.low %v213, %v227
    %v236 = vcombine.high %v213, %v227
    %v237 = vcombine.low %v220, %v234
    %v238 = vcombine.high %v220, %v234
    %v255 = vpack.c.bf16 %v199, %v127
    %v256 = vpack.c.bf16 %v200, %v128
    %v257 = vpack.c.bf16 %v201, %v129
    %v258 = vpack.c.bf16 %v202, %v130
    %v259 = vpack.c.bf16 %v235, %v163
    %v260 = vpack.c.bf16 %v236, %v164
    %v261 = vpack.c.bf16 %v237, %v165
    %v262 = vpack.c.bf16 %v238, %v166
    %v263 = vld [vmem:[#allocation5] sm:$0xff]
    %v264 = vld [vmem:[#allocation5 + $0x8] sm:$0xff]
    %v265 = vld [vmem:[#allocation5 + $0x10] sm:$0xff]
    %v266 = vld [vmem:[#allocation5 + $0x18] sm:$0xff]
    %v267 = vld [vmem:[#allocation5 + $0x20] sm:$0xff]
    %v268 = vld [vmem:[#allocation5 + $0x28] sm:$0xff]
    %v269 = vld [vmem:[#allocation5 + $0x30] sm:$0xff]
    %v270 = vld [vmem:[#allocation5 + $0x38] sm:$0xff]
    %v271 = vld [vmem:[#allocation5 + $0x40] sm:$0xff]
    %v272 = vld [vmem:[#allocation5 + $0x48] sm:$0xff]
    %v273 = vld [vmem:[#allocation5 + $0x50] sm:$0xff]
    %v274 = vld [vmem:[#allocation5 + $0x58] sm:$0xff]
    %v275 = vld [vmem:[#allocation5 + $0x60] sm:$0xff]
    %v276 = vld [vmem:[#allocation5 + $0x68] sm:$0xff]
    %v277 = vld [vmem:[#allocation5 + $0x70] sm:$0xff]
    %v278 = vld [vmem:[#allocation5 + $0x78] sm:$0xff]
    %v279 = vld [vmem:[#allocation5 + $0x80] sm:$0xff]
    %v280 = vld [vmem:[#allocation5 + $0x88] sm:$0xff]
    %v281 = vld [vmem:[#allocation5 + $0x90] sm:$0xff]
    %v282 = vld [vmem:[#allocation5 + $0x98] sm:$0xff]
    %v283 = vld [vmem:[#allocation5 + $0xa0] sm:$0xff]
    %v284 = vld [vmem:[#allocation5 + $0xa8] sm:$0xff]
    %v285 = vld [vmem:[#allocation5 + $0xb0] sm:$0xff]
    %v286 = vld [vmem:[#allocation5 + $0xb8] sm:$0xff]
    %v287 = vld [vmem:[#allocation5 + $0xc0] sm:$0xff]
    %v288 = vld [vmem:[#allocation5 + $0xc8] sm:$0xff]
    %v289 = vld [vmem:[#allocation5 + $0xd0] sm:$0xff]
    %v290 = vld [vmem:[#allocation5 + $0xd8] sm:$0xff]
    %v291 = vld [vmem:[#allocation5 + $0xe0] sm:$0xff]
    %v292 = vld [vmem:[#allocation5 + $0xe8] sm:$0xff]
    %v293 = vld [vmem:[#allocation5 + $0xf0] sm:$0xff]
    %v294 = vld [vmem:[#allocation5 + $0xf8] sm:$0xff]
    %v295 = vld [vmem:[#allocation5 + $0x100] sm:$0xff]
    %v296 = vld [vmem:[#allocation5 + $0x108] sm:$0xff]
    %v297 = vld [vmem:[#allocation5 + $0x110] sm:$0xff]
    %v298 = vld [vmem:[#allocation5 + $0x118] sm:$0xff]
    %v299 = vld [vmem:[#allocation5 + $0x120] sm:$0xff]
    %v300 = vld [vmem:[#allocation5 + $0x128] sm:$0xff]
    %v301 = vld [vmem:[#allocation5 + $0x130] sm:$0xff]
    %v302 = vld [vmem:[#allocation5 + $0x138] sm:$0xff]
    %v303 = vld [vmem:[#allocation5 + $0x140] sm:$0xff]
    %v304 = vld [vmem:[#allocation5 + $0x148] sm:$0xff]
    %v305 = vld [vmem:[#allocation5 + $0x150] sm:$0xff]
    %v306 = vld [vmem:[#allocation5 + $0x158] sm:$0xff]
    %v307 = vld [vmem:[#allocation5 + $0x160] sm:$0xff]
    %v308 = vld [vmem:[#allocation5 + $0x168] sm:$0xff]
    %v309 = vld [vmem:[#allocation5 + $0x170] sm:$0xff]
    %v310 = vld [vmem:[#allocation5 + $0x178] sm:$0xff]
    %v311 = vld [vmem:[#allocation5 + $0x180] sm:$0xff]
    %v312 = vld [vmem:[#allocation5 + $0x188] sm:$0xff]
    %v313 = vld [vmem:[#allocation5 + $0x190] sm:$0xff]
    %v314 = vld [vmem:[#allocation5 + $0x198] sm:$0xff]
    %v315 = vld [vmem:[#allocation5 + $0x1a0] sm:$0xff]
    %v316 = vld [vmem:[#allocation5 + $0x1a8] sm:$0xff]
    %v317 = vld [vmem:[#allocation5 + $0x1b0] sm:$0xff]
    %v318 = vld [vmem:[#allocation5 + $0x1b8] sm:$0xff]
    %v319 = vld [vmem:[#allocation5 + $0x1c0] sm:$0xff]
    %v320 = vld [vmem:[#allocation5 + $0x1c8] sm:$0xff]
    %v321 = vld [vmem:[#allocation5 + $0x1d0] sm:$0xff]
    %v322 = vld [vmem:[#allocation5 + $0x1d8] sm:$0xff]
    %v323 = vld [vmem:[#allocation5 + $0x1e0] sm:$0xff]
    %v324 = vld [vmem:[#allocation5 + $0x1e8] sm:$0xff]
    %v325 = vld [vmem:[#allocation5 + $0x1f0] sm:$0xff]
    %v326 = vld [vmem:[#allocation5 + $0x1f8] sm:$0xff]
    %v327 = vld [vmem:[#allocation5 + $0x200] sm:$0xff]
    %v328 = vld [vmem:[#allocation5 + $0x208] sm:$0xff]
    %v329 = vld [vmem:[#allocation5 + $0x210] sm:$0xff]
    %v330 = vld [vmem:[#allocation5 + $0x218] sm:$0xff]
    %v331 = vld [vmem:[#allocation5 + $0x220] sm:$0xff]
    %v332 = vld [vmem:[#allocation5 + $0x228] sm:$0xff]
    %v333 = vld [vmem:[#allocation5 + $0x230] sm:$0xff]
    %v334 = vld [vmem:[#allocation5 + $0x238] sm:$0xff]
    %v335 = vld [vmem:[#allocation5 + $0x240] sm:$0xff]
    %v336 = vld [vmem:[#allocation5 + $0x248] sm:$0xff]
    %v337 = vld [vmem:[#allocation5 + $0x250] sm:$0xff]
    %v338 = vld [vmem:[#allocation5 + $0x258] sm:$0xff]
    %v339 = vld [vmem:[#allocation5 + $0x260] sm:$0xff]
    %v340 = vld [vmem:[#allocation5 + $0x268] sm:$0xff]
    %v341 = vld [vmem:[#allocation5 + $0x270] sm:$0xff]
    %v342 = vld [vmem:[#allocation5 + $0x278] sm:$0xff]
    %v343 = vld [vmem:[#allocation5 + $0x280] sm:$0xff]
    %v344 = vld [vmem:[#allocation5 + $0x288] sm:$0xff]
    %v345 = vld [vmem:[#allocation5 + $0x290] sm:$0xff]
    %v346 = vld [vmem:[#allocation5 + $0x298] sm:$0xff]
    %v347 = vld [vmem:[#allocation5 + $0x2a0] sm:$0xff]
    %v348 = vld [vmem:[#allocation5 + $0x2a8] sm:$0xff]
    %v349 = vld [vmem:[#allocation5 + $0x2b0] sm:$0xff]
    %v350 = vld [vmem:[#allocation5 + $0x2b8] sm:$0xff]
    %v351 = vld [vmem:[#allocation5 + $0x2c0] sm:$0xff]
    %v352 = vld [vmem:[#allocation5 + $0x2c8] sm:$0xff]
    %v353 = vld [vmem:[#allocation5 + $0x2d0] sm:$0xff]
    %v354 = vld [vmem:[#allocation5 + $0x2d8] sm:$0xff]
    %v355 = vld [vmem:[#allocation5 + $0x2e0] sm:$0xff]
    %v356 = vld [vmem:[#allocation5 + $0x2e8] sm:$0xff]
    %v357 = vld [vmem:[#allocation5 + $0x2f0] sm:$0xff]
    %v358 = vld [vmem:[#allocation5 + $0x2f8] sm:$0xff]
    %v359 = vld [vmem:[#allocation5 + $0x300] sm:$0xff]
    %v360 = vld [vmem:[#allocation5 + $0x308] sm:$0xff]
    %v361 = vld [vmem:[#allocation5 + $0x310] sm:$0xff]
    %v362 = vld [vmem:[#allocation5 + $0x318] sm:$0xff]
    %v363 = vld [vmem:[#allocation5 + $0x320] sm:$0xff]
    %v364 = vld [vmem:[#allocation5 + $0x328] sm:$0xff]
    %v365 = vld [vmem:[#allocation5 + $0x330] sm:$0xff]
    %v366 = vld [vmem:[#allocation5 + $0x338] sm:$0xff]
    %v367 = vld [vmem:[#allocation5 + $0x340] sm:$0xff]
    %v368 = vld [vmem:[#allocation5 + $0x348] sm:$0xff]
    %v369 = vld [vmem:[#allocation5 + $0x350] sm:$0xff]
    %v370 = vld [vmem:[#allocation5 + $0x358] sm:$0xff]
    %v371 = vld [vmem:[#allocation5 + $0x360] sm:$0xff]
    %v372 = vld [vmem:[#allocation5 + $0x368] sm:$0xff]
    %v373 = vld [vmem:[#allocation5 + $0x370] sm:$0xff]
    %v374 = vld [vmem:[#allocation5 + $0x378] sm:$0xff]
    %v375 = vld [vmem:[#allocation5 + $0x380] sm:$0xff]
    %v376 = vld [vmem:[#allocation5 + $0x388] sm:$0xff]
    %v377 = vld [vmem:[#allocation5 + $0x390] sm:$0xff]
    %v378 = vld [vmem:[#allocation5 + $0x398] sm:$0xff]
    %v379 = vld [vmem:[#allocation5 + $0x3a0] sm:$0xff]
    %v380 = vld [vmem:[#allocation5 + $0x3a8] sm:$0xff]
    %v381 = vld [vmem:[#allocation5 + $0x3b0] sm:$0xff]
    %v382 = vld [vmem:[#allocation5 + $0x3b8] sm:$0xff]
    %v383 = vld [vmem:[#allocation5 + $0x3c0] sm:$0xff]
    %v384 = vld [vmem:[#allocation5 + $0x3c8] sm:$0xff]
    %v385 = vld [vmem:[#allocation5 + $0x3d0] sm:$0xff]
    %v386 = vld [vmem:[#allocation5 + $0x3d8] sm:$0xff]
    %v387 = vld [vmem:[#allocation5 + $0x3e0] sm:$0xff]
    %v388 = vld [vmem:[%s2] sm:$0x3]
    %v390 = vlaneseq
    %v391 = vshrl.u32 %v390, 7
    %v392 = vsub.s32 0, %v391
    %v393 = vrot.slane %v388, %v392
    %v394 = vlaneseq
    %v395 = vshrl.u32 %v394, 7
    %v396 = vsub.s32 1, %v395
    %v397 = vrot.slane %v388, %v396
    %v525 = vunpack.c.l.b16 %v263
    %v526 = vunpack.c.h.b16 %v263
    %v527 = vunpack.c.l.b16 %v264
    %v528 = vunpack.c.h.b16 %v264
    %v529 = vunpack.c.l.b16 %v265
    %v530 = vunpack.c.h.b16 %v265
    %v531 = vunpack.c.l.b16 %v266
    %v532 = vunpack.c.h.b16 %v266
    %v533 = vunpack.c.l.b16 %v267
    %v534 = vunpack.c.h.b16 %v267
    %v535 = vunpack.c.l.b16 %v268
    %v536 = vunpack.c.h.b16 %v268
    %v537 = vunpack.c.l.b16 %v269
    %v538 = vunpack.c.h.b16 %v269
    %v539 = vunpack.c.l.b16 %v270
    %v540 = vunpack.c.h.b16 %v270
    %v541 = vunpack.c.l.b16 %v271
    %v542 = vunpack.c.h.b16 %v271
    %v543 = vunpack.c.l.b16 %v272
    %v544 = vunpack.c.h.b16 %v272
    %v545 = vunpack.c.l.b16 %v273
    %v546 = vunpack.c.h.b16 %v273
    %v547 = vunpack.c.l.b16 %v274
    %v548 = vunpack.c.h.b16 %v274
    %v549 = vunpack.c.l.b16 %v275
    %v550 = vunpack.c.h.b16 %v275
    %v551 = vunpack.c.l.b16 %v276
    %v552 = vunpack.c.h.b16 %v276
    %v553 = vunpack.c.l.b16 %v277
    %v554 = vunpack.c.h.b16 %v277
    %v555 = vunpack.c.l.b16 %v278
    %v556 = vunpack.c.h.b16 %v278
    %v557 = vunpack.c.l.b16 %v279
    %v558 = vunpack.c.h.b16 %v279
    %v559 = vunpack.c.l.b16 %v280
    %v560 = vunpack.c.h.b16 %v280
    %v561 = vunpack.c.l.b16 %v281
    %v562 = vunpack.c.h.b16 %v281
    %v563 = vunpack.c.l.b16 %v282
    %v564 = vunpack.c.h.b16 %v282
    %v565 = vunpack.c.l.b16 %v283
    %v566 = vunpack.c.h.b16 %v283
    %v567 = vunpack.c.l.b16 %v284
    %v568 = vunpack.c.h.b16 %v284
    %v569 = vunpack.c.l.b16 %v285
    %v570 = vunpack.c.h.b16 %v285
    %v571 = vunpack.c.l.b16 %v286
    %v572 = vunpack.c.h.b16 %v286
    %v573 = vunpack.c.l.b16 %v287
    %v574 = vunpack.c.h.b16 %v287
    %v575 = vunpack.c.l.b16 %v288
    %v576 = vunpack.c.h.b16 %v288
    %v577 = vunpack.c.l.b16 %v289
    %v578 = vunpack.c.h.b16 %v289
    %v579 = vunpack.c.l.b16 %v290
    %v580 = vunpack.c.h.b16 %v290
    %v581 = vunpack.c.l.b16 %v291
    %v582 = vunpack.c.h.b16 %v291
    %v583 = vunpack.c.l.b16 %v292
    %v584 = vunpack.c.h.b16 %v292
    %v585 = vunpack.c.l.b16 %v293
    %v586 = vunpack.c.h.b16 %v293
    %v587 = vunpack.c.l.b16 %v294
    %v588 = vunpack.c.h.b16 %v294
    %v589 = vunpack.c.l.b16 %v295
    %v590 = vunpack.c.h.b16 %v295
    %v591 = vunpack.c.l.b16 %v296
    %v592 = vunpack.c.h.b16 %v296
    %v593 = vunpack.c.l.b16 %v297
    %v594 = vunpack.c.h.b16 %v297
    %v595 = vunpack.c.l.b16 %v298
    %v596 = vunpack.c.h.b16 %v298
    %v597 = vunpack.c.l.b16 %v299
    %v598 = vunpack.c.h.b16 %v299
    %v599 = vunpack.c.l.b16 %v300
    %v600 = vunpack.c.h.b16 %v300
    %v601 = vunpack.c.l.b16 %v301
    %v602 = vunpack.c.h.b16 %v301
    %v603 = vunpack.c.l.b16 %v302
    %v604 = vunpack.c.h.b16 %v302
    %v605 = vunpack.c.l.b16 %v303
    %v606 = vunpack.c.h.b16 %v303
    %v607 = vunpack.c.l.b16 %v304
    %v608 = vunpack.c.h.b16 %v304
    %v609 = vunpack.c.l.b16 %v305
    %v610 = vunpack.c.h.b16 %v305
    %v611 = vunpack.c.l.b16 %v306
    %v612 = vunpack.c.h.b16 %v306
    %v613 = vunpack.c.l.b16 %v307
    %v614 = vunpack.c.h.b16 %v307
    %v615 = vunpack.c.l.b16 %v308
    %v616 = vunpack.c.h.b16 %v308
    %v617 = vunpack.c.l.b16 %v309
    %v618 = vunpack.c.h.b16 %v309
    %v619 = vunpack.c.l.b16 %v310
    %v620 = vunpack.c.h.b16 %v310
    %v621 = vunpack.c.l.b16 %v311
    %v622 = vunpack.c.h.b16 %v311
    %v623 = vunpack.c.l.b16 %v312
    %v624 = vunpack.c.h.b16 %v312
    %v625 = vunpack.c.l.b16 %v313
    %v626 = vunpack.c.h.b16 %v313
    %v627 = vunpack.c.l.b16 %v314
    %v628 = vunpack.c.h.b16 %v314
    %v629 = vunpack.c.l.b16 %v315
    %v630 = vunpack.c.h.b16 %v315
    %v631 = vunpack.c.l.b16 %v316
    %v632 = vunpack.c.h.b16 %v316
    %v633 = vunpack.c.l.b16 %v317
    %v634 = vunpack.c.h.b16 %v317
    %v635 = vunpack.c.l.b16 %v318
    %v636 = vunpack.c.h.b16 %v318
    %v637 = vunpack.c.l.b16 %v319
    %v638 = vunpack.c.h.b16 %v319
    %v639 = vunpack.c.l.b16 %v320
    %v640 = vunpack.c.h.b16 %v320
    %v641 = vunpack.c.l.b16 %v321
    %v642 = vunpack.c.h.b16 %v321
    %v643 = vunpack.c.l.b16 %v322
    %v644 = vunpack.c.h.b16 %v322
    %v645 = vunpack.c.l.b16 %v323
    %v646 = vunpack.c.h.b16 %v323
    %v647 = vunpack.c.l.b16 %v324
    %v648 = vunpack.c.h.b16 %v324
    %v649 = vunpack.c.l.b16 %v325
    %v650 = vunpack.c.h.b16 %v325
    %v651 = vunpack.c.l.b16 %v326
    %v652 = vunpack.c.h.b16 %v326
    %v653 = vunpack.c.l.b16 %v327
    %v654 = vunpack.c.h.b16 %v327
    %v655 = vunpack.c.l.b16 %v328
    %v656 = vunpack.c.h.b16 %v328
    %v657 = vunpack.c.l.b16 %v329
    %v658 = vunpack.c.h.b16 %v329
    %v659 = vunpack.c.l.b16 %v330
    %v660 = vunpack.c.h.b16 %v330
    %v661 = vunpack.c.l.b16 %v331
    %v662 = vunpack.c.h.b16 %v331
    %v663 = vunpack.c.l.b16 %v332
    %v664 = vunpack.c.h.b16 %v332
    %v665 = vunpack.c.l.b16 %v333
    %v666 = vunpack.c.h.b16 %v333
    %v667 = vunpack.c.l.b16 %v334
    %v668 = vunpack.c.h.b16 %v334
    %v669 = vunpack.c.l.b16 %v335
    %v670 = vunpack.c.h.b16 %v335
    %v671 = vunpack.c.l.b16 %v336
    %v672 = vunpack.c.h.b16 %v336
    %v673 = vunpack.c.l.b16 %v337
    %v674 = vunpack.c.h.b16 %v337
    %v675 = vunpack.c.l.b16 %v338
    %v676 = vunpack.c.h.b16 %v338
    %v677 = vunpack.c.l.b16 %v339
    %v678 = vunpack.c.h.b16 %v339
    %v679 = vunpack.c.l.b16 %v340
    %v680 = vunpack.c.h.b16 %v340
    %v681 = vunpack.c.l.b16 %v341
    %v682 = vunpack.c.h.b16 %v341
    %v683 = vunpack.c.l.b16 %v342
    %v684 = vunpack.c.h.b16 %v342
    %v685 = vunpack.c.l.b16 %v343
    %v686 = vunpack.c.h.b16 %v343
    %v687 = vunpack.c.l.b16 %v344
    %v688 = vunpack.c.h.b16 %v344
    %v689 = vunpack.c.l.b16 %v345
    %v690 = vunpack.c.h.b16 %v345
    %v691 = vunpack.c.l.b16 %v346
    %v692 = vunpack.c.h.b16 %v346
    %v693 = vunpack.c.l.b16 %v347
    %v694 = vunpack.c.h.b16 %v347
    %v695 = vunpack.c.l.b16 %v348
    %v696 = vunpack.c.h.b16 %v348
    %v697 = vunpack.c.l.b16 %v349
    %v698 = vunpack.c.h.b16 %v349
    %v699 = vunpack.c.l.b16 %v350
    %v700 = vunpack.c.h.b16 %v350
    %v701 = vunpack.c.l.b16 %v351
    %v702 = vunpack.c.h.b16 %v351
    %v703 = vunpack.c.l.b16 %v352
    %v704 = vunpack.c.h.b16 %v352
    %v705 = vunpack.c.l.b16 %v353
    %v706 = vunpack.c.h.b16 %v353
    %v707 = vunpack.c.l.b16 %v354
    %v708 = vunpack.c.h.b16 %v354
    %v709 = vunpack.c.l.b16 %v355
    %v710 = vunpack.c.h.b16 %v355
    %v711 = vunpack.c.l.b16 %v356
    %v712 = vunpack.c.h.b16 %v356
    %v713 = vunpack.c.l.b16 %v357
    %v714 = vunpack.c.h.b16 %v357
    %v715 = vunpack.c.l.b16 %v358
    %v716 = vunpack.c.h.b16 %v358
    %v717 = vunpack.c.l.b16 %v359
    %v718 = vunpack.c.h.b16 %v359
    %v719 = vunpack.c.l.b16 %v360
    %v720 = vunpack.c.h.b16 %v360
    %v721 = vunpack.c.l.b16 %v361
    %v722 = vunpack.c.h.b16 %v361
    %v723 = vunpack.c.l.b16 %v362
    %v724 = vunpack.c.h.b16 %v362
    %v725 = vunpack.c.l.b16 %v363
    %v726 = vunpack.c.h.b16 %v363
    %v727 = vunpack.c.l.b16 %v364
    %v728 = vunpack.c.h.b16 %v364
    %v729 = vunpack.c.l.b16 %v365
    %v730 = vunpack.c.h.b16 %v365
    %v731 = vunpack.c.l.b16 %v366
    %v732 = vunpack.c.h.b16 %v366
    %v733 = vunpack.c.l.b16 %v367
    %v734 = vunpack.c.h.b16 %v367
    %v735 = vunpack.c.l.b16 %v368
    %v736 = vunpack.c.h.b16 %v368
    %v737 = vunpack.c.l.b16 %v369
    %v738 = vunpack.c.h.b16 %v369
    %v739 = vunpack.c.l.b16 %v370
    %v740 = vunpack.c.h.b16 %v370
    %v741 = vunpack.c.l.b16 %v371
    %v742 = vunpack.c.h.b16 %v371
    %v743 = vunpack.c.l.b16 %v372
    %v744 = vunpack.c.h.b16 %v372
    %v745 = vunpack.c.l.b16 %v373
    %v746 = vunpack.c.h.b16 %v373
    %v747 = vunpack.c.l.b16 %v374
    %v748 = vunpack.c.h.b16 %v374
    %v749 = vunpack.c.l.b16 %v375
    %v750 = vunpack.c.h.b16 %v375
    %v751 = vunpack.c.l.b16 %v376
    %v752 = vunpack.c.h.b16 %v376
    %v753 = vunpack.c.l.b16 %v377
    %v754 = vunpack.c.h.b16 %v377
    %v755 = vunpack.c.l.b16 %v378
    %v756 = vunpack.c.h.b16 %v378
    %v757 = vunpack.c.l.b16 %v379
    %v758 = vunpack.c.h.b16 %v379
    %v759 = vunpack.c.l.b16 %v380
    %v760 = vunpack.c.h.b16 %v380
    %v761 = vunpack.c.l.b16 %v381
    %v762 = vunpack.c.h.b16 %v381
    %v763 = vunpack.c.l.b16 %v382
    %v764 = vunpack.c.h.b16 %v382
    %v765 = vunpack.c.l.b16 %v383
    %v766 = vunpack.c.h.b16 %v383
    %v767 = vunpack.c.l.b16 %v384
    %v768 = vunpack.c.h.b16 %v384
    %v769 = vunpack.c.l.b16 %v385
    %v770 = vunpack.c.h.b16 %v385
    %v771 = vunpack.c.l.b16 %v386
    %v772 = vunpack.c.h.b16 %v386
    %v773 = vunpack.c.l.b16 %v387
    %v774 = vunpack.c.h.b16 %v387
    %v775 = vpack.c.b16 %v527, %v525
    %v776 = vpack.c.b16 %v528, %v526
    %v777 = vpack.c.b16 %v531, %v529
    %v778 = vpack.c.b16 %v532, %v530
    %v779 = vpack.c.b16 %v535, %v533
    %v780 = vpack.c.b16 %v536, %v534
    %v781 = vpack.c.b16 %v539, %v537
    %v782 = vpack.c.b16 %v540, %v538
    %v783 = vpack.c.b16 %v543, %v541
    %v784 = vpack.c.b16 %v544, %v542
    %v785 = vpack.c.b16 %v547, %v545
    %v786 = vpack.c.b16 %v548, %v546
    %v787 = vpack.c.b16 %v551, %v549
    %v788 = vpack.c.b16 %v552, %v550
    %v789 = vpack.c.b16 %v555, %v553
    %v790 = vpack.c.b16 %v556, %v554
    %v791 = vpack.c.b16 %v559, %v557
    %v792 = vpack.c.b16 %v560, %v558
    %v793 = vpack.c.b16 %v563, %v561
    %v794 = vpack.c.b16 %v564, %v562
    %v795 = vpack.c.b16 %v567, %v565
    %v796 = vpack.c.b16 %v568, %v566
    %v797 = vpack.c.b16 %v571, %v569
    %v798 = vpack.c.b16 %v572, %v570
    %v799 = vpack.c.b16 %v575, %v573
    %v800 = vpack.c.b16 %v576, %v574
    %v801 = vpack.c.b16 %v579, %v577
    %v802 = vpack.c.b16 %v580, %v578
    %v803 = vpack.c.b16 %v583, %v581
    %v804 = vpack.c.b16 %v584, %v582
    %v805 = vpack.c.b16 %v587, %v585
    %v806 = vpack.c.b16 %v588, %v586
    %v807 = vpack.c.b16 %v591, %v589
    %v808 = vpack.c.b16 %v592, %v590
    %v809 = vpack.c.b16 %v595, %v593
    %v810 = vpack.c.b16 %v596, %v594
    %v811 = vpack.c.b16 %v599, %v597
    %v812 = vpack.c.b16 %v600, %v598
    %v813 = vpack.c.b16 %v603, %v601
    %v814 = vpack.c.b16 %v604, %v602
    %v815 = vpack.c.b16 %v607, %v605
    %v816 = vpack.c.b16 %v608, %v606
    %v817 = vpack.c.b16 %v611, %v609
    %v818 = vpack.c.b16 %v612, %v610
    %v819 = vpack.c.b16 %v615, %v613
    %v820 = vpack.c.b16 %v616, %v614
    %v821 = vpack.c.b16 %v619, %v617
    %v822 = vpack.c.b16 %v620, %v618
    %v823 = vpack.c.b16 %v623, %v621
    %v824 = vpack.c.b16 %v624, %v622
    %v825 = vpack.c.b16 %v627, %v625
    %v826 = vpack.c.b16 %v628, %v626
    %v827 = vpack.c.b16 %v631, %v629
    %v828 = vpack.c.b16 %v632, %v630
    %v829 = vpack.c.b16 %v635, %v633
    %v830 = vpack.c.b16 %v636, %v634
    %v831 = vpack.c.b16 %v639, %v637
    %v832 = vpack.c.b16 %v640, %v638
    %v833 = vpack.c.b16 %v643, %v641
    %v834 = vpack.c.b16 %v644, %v642
    %v835 = vpack.c.b16 %v647, %v645
    %v836 = vpack.c.b16 %v648, %v646
    %v837 = vpack.c.b16 %v651, %v649
    %v838 = vpack.c.b16 %v652, %v650
    %v839 = vpack.c.b16 %v655, %v653
    %v840 = vpack.c.b16 %v656, %v654
    %v841 = vpack.c.b16 %v659, %v657
    %v842 = vpack.c.b16 %v660, %v658
    %v843 = vpack.c.b16 %v663, %v661
    %v844 = vpack.c.b16 %v664, %v662
    %v845 = vpack.c.b16 %v667, %v665
    %v846 = vpack.c.b16 %v668, %v666
    %v847 = vpack.c.b16 %v671, %v669
    %v848 = vpack.c.b16 %v672, %v670
    %v849 = vpack.c.b16 %v675, %v673
    %v850 = vpack.c.b16 %v676, %v674
    %v851 = vpack.c.b16 %v679, %v677
    %v852 = vpack.c.b16 %v680, %v678
    %v853 = vpack.c.b16 %v683, %v681
    %v854 = vpack.c.b16 %v684, %v682
    %v855 = vpack.c.b16 %v687, %v685
    %v856 = vpack.c.b16 %v688, %v686
    %v857 = vpack.c.b16 %v691, %v689
    %v858 = vpack.c.b16 %v692, %v690
    %v859 = vpack.c.b16 %v695, %v693
    %v860 = vpack.c.b16 %v696, %v694
    %v861 = vpack.c.b16 %v699, %v697
    %v862 = vpack.c.b16 %v700, %v698
    %v863 = vpack.c.b16 %v703, %v701
    %v864 = vpack.c.b16 %v704, %v702
    %v865 = vpack.c.b16 %v707, %v705
    %v866 = vpack.c.b16 %v708, %v706
    %v867 = vpack.c.b16 %v711, %v709
    %v868 = vpack.c.b16 %v712, %v710
    %v869 = vpack.c.b16 %v715, %v713
    %v870 = vpack.c.b16 %v716, %v714
    %v871 = vpack.c.b16 %v719, %v717
    %v872 = vpack.c.b16 %v720, %v718
    %v873 = vpack.c.b16 %v723, %v721
    %v874 = vpack.c.b16 %v724, %v722
    %v875 = vpack.c.b16 %v727, %v725
    %v876 = vpack.c.b16 %v728, %v726
    %v877 = vpack.c.b16 %v731, %v729
    %v878 = vpack.c.b16 %v732, %v730
    %v879 = vpack.c.b16 %v735, %v733
    %v880 = vpack.c.b16 %v736, %v734
    %v881 = vpack.c.b16 %v739, %v737
    %v882 = vpack.c.b16 %v740, %v738
    %v883 = vpack.c.b16 %v743, %v741
    %v884 = vpack.c.b16 %v744, %v742
    %v885 = vpack.c.b16 %v747, %v745
    %v886 = vpack.c.b16 %v748, %v746
    %v887 = vpack.c.b16 %v751, %v749
    %v888 = vpack.c.b16 %v752, %v750
    %v889 = vpack.c.b16 %v755, %v753
    %v890 = vpack.c.b16 %v756, %v754
    %v891 = vpack.c.b16 %v759, %v757
    %v892 = vpack.c.b16 %v760, %v758
    %v893 = vpack.c.b16 %v763, %v761
    %v894 = vpack.c.b16 %v764, %v762
    %v895 = vpack.c.b16 %v767, %v765
    %v896 = vpack.c.b16 %v768, %v766
    %v897 = vpack.c.b16 %v771, %v769
    %v898 = vpack.c.b16 %v772, %v770
    %v899 = vpack.c.b16 %v773, %v773
    %v900 = vpack.c.b16 %v774, %v774
    %vm1025 = vcmask 850944
    %v1027 = vsel %vm1025, %v262, 0
    %vm1029 = vcmask 1043456
    %v1031 = vsel %vm1029, %v899, 0
    %v1034 = vsel %vm1029, %v900, 0
    %1036 = vmatprep.subr.bf16.mxu0 %v790
    %1037 = vmatpush1.bf16.msra.mxu0 %v789
    %1038 = vmatprep.subr.bf16.mxu0 %v788
    %1039 = vmatpush1.bf16.msra.mxu0 %v787
    %1040 = vmatprep.subr.bf16.mxu0 %v786
    %1041 = vmatpush1.bf16.msra.mxu0 %v785
    %1042 = vmatprep.subr.bf16.mxu0 %v784
    %1043 = vmatpush1.bf16.msra.mxu0 %v783
    %1044 = vmatprep.subr.bf16.mxu0 %v782
    %1045 = vmatpush1.bf16.msra.mxu0 %v781
    %1046 = vmatprep.subr.bf16.mxu0 %v780
    %1047 = vmatpush1.bf16.msra.mxu0 %v779
    %1048 = vmatprep.subr.bf16.mxu0 %v778
    %1049 = vmatpush1.bf16.msra.mxu0 %v777
    %1050 = vmatprep.subr.bf16.mxu0 %v776
    %1051 = vmatpush1.bf16.msra.mxu0 %v775
    %1052 = vmatprep.subr.bf16.mxu0 %v806
    %1053 = vmatpush2.bf16.msra.mxu0 %v805
    %1054 = vmatprep.subr.bf16.mxu0 %v804
    %1055 = vmatpush2.bf16.msra.mxu0 %v803
    %1056 = vmatprep.subr.bf16.mxu0 %v802
    %1057 = vmatpush2.bf16.msra.mxu0 %v801
    %1058 = vmatprep.subr.bf16.mxu0 %v800
    %1059 = vmatpush2.bf16.msra.mxu0 %v799
    %1060 = vmatprep.subr.bf16.mxu0 %v798
    %1061 = vmatpush2.bf16.msra.mxu0 %v797
    %1062 = vmatprep.subr.bf16.mxu0 %v796
    %1063 = vmatpush2.bf16.msra.mxu0 %v795
    %1064 = vmatprep.subr.bf16.mxu0 %v794
    %1065 = vmatpush2.bf16.msra.mxu0 %v793
    %1066 = vmatprep.subr.bf16.mxu0 %v792
    %1067 = vmatpush2.bf16.msra.mxu0 %v791
    %1068 = vmatprep.mubr.bf16.mxu0 %v256
    %1069 = vmatmul.mubr.bf16.gmra.mxu0 %v255
    %v1070 = vpop.f32.mrf.mxu0
    %v1071 = vadd.f32 %v393, %v1070
    %v1072 = vpop.f32.mrf.mxu0
    %v1073 = vadd.f32 %v397, %v1072
    %v1074 = vpop.f32.mrf.mxu0
    %v1075 = vadd.f32 %v393, %v1074
    %v1076 = vpop.f32.mrf.mxu0
    %v1077 = vadd.f32 %v397, %v1076
    %1078 = vdwg.mxu0
    %1079 = vmatprep.subr.bf16.mxu0 %v822
    %1080 = vmatpush1.bf16.msra.mxu0 %v821
    %1081 = vmatprep.subr.bf16.mxu0 %v820
    %1082 = vmatpush1.bf16.msra.mxu0 %v819
    %1083 = vmatprep.subr.bf16.mxu0 %v818
    %1084 = vmatpush1.bf16.msra.mxu0 %v817
    %1085 = vmatprep.subr.bf16.mxu0 %v816
    %1086 = vmatpush1.bf16.msra.mxu0 %v815
    %1087 = vmatprep.subr.bf16.mxu0 %v814
    %1088 = vmatpush1.bf16.msra.mxu0 %v813
    %1089 = vmatprep.subr.bf16.mxu0 %v812
    %1090 = vmatpush1.bf16.msra.mxu0 %v811
    %1091 = vmatprep.subr.bf16.mxu0 %v810
    %1092 = vmatpush1.bf16.msra.mxu0 %v809
    %1093 = vmatprep.subr.bf16.mxu0 %v808
    %1094 = vmatpush1.bf16.msra.mxu0 %v807
    %1095 = vmatprep.subr.bf16.mxu0 %v838
    %1096 = vmatpush2.bf16.msra.mxu0 %v837
    %1097 = vmatprep.subr.bf16.mxu0 %v836
    %1098 = vmatpush2.bf16.msra.mxu0 %v835
    %1099 = vmatprep.subr.bf16.mxu0 %v834
    %1100 = vmatpush2.bf16.msra.mxu0 %v833
    %1101 = vmatprep.subr.bf16.mxu0 %v832
    %1102 = vmatpush2.bf16.msra.mxu0 %v831
    %1103 = vmatprep.subr.bf16.mxu0 %v830
    %1104 = vmatpush2.bf16.msra.mxu0 %v829
    %1105 = vmatprep.subr.bf16.mxu0 %v828
    %1106 = vmatpush2.bf16.msra.mxu0 %v827
    %1107 = vmatprep.subr.bf16.mxu0 %v826
    %1108 = vmatpush2.bf16.msra.mxu0 %v825
    %1109 = vmatprep.subr.bf16.mxu0 %v824
    %1110 = vmatpush2.bf16.msra.mxu0 %v823
    %1111 = vmatprep.mubr.bf16.mxu0 %v258
    %1112 = vmatmul.mubr.bf16.gmra.mxu0 %v257
    %v1113 = vpop.f32.mrf.mxu0
    %v1114 = vadd.f32 %v1071, %v1113
    %v1115 = vpop.f32.mrf.mxu0
    %v1116 = vadd.f32 %v1073, %v1115
    %v1117 = vpop.f32.mrf.mxu0
    %v1118 = vadd.f32 %v1075, %v1117
    %v1119 = vpop.f32.mrf.mxu0
    %v1120 = vadd.f32 %v1077, %v1119
    %1121 = vdwg.mxu0
    %1122 = vmatprep.subr.bf16.mxu0 %v854
    %1123 = vmatpush1.bf16.msra.mxu0 %v853
    %1124 = vmatprep.subr.bf16.mxu0 %v852
    %1125 = vmatpush1.bf16.msra.mxu0 %v851
    %1126 = vmatprep.subr.bf16.mxu0 %v850
    %1127 = vmatpush1.bf16.msra.mxu0 %v849
    %1128 = vmatprep.subr.bf16.mxu0 %v848
    %1129 = vmatpush1.bf16.msra.mxu0 %v847
    %1130 = vmatprep.subr.bf16.mxu0 %v846
    %1131 = vmatpush1.bf16.msra.mxu0 %v845
    %1132 = vmatprep.subr.bf16.mxu0 %v844
    %1133 = vmatpush1.bf16.msra.mxu0 %v843
    %1134 = vmatprep.subr.bf16.mxu0 %v842
    %1135 = vmatpush1.bf16.msra.mxu0 %v841
    %1136 = vmatprep.subr.bf16.mxu0 %v840
    %1137 = vmatpush1.bf16.msra.mxu0 %v839
    %1138 = vmatprep.subr.bf16.mxu0 %v870
    %1139 = vmatpush2.bf16.msra.mxu0 %v869
    %1140 = vmatprep.subr.bf16.mxu0 %v868
    %1141 = vmatpush2.bf16.msra.mxu0 %v867
    %1142 = vmatprep.subr.bf16.mxu0 %v866
    %1143 = vmatpush2.bf16.msra.mxu0 %v865
    %1144 = vmatprep.subr.bf16.mxu0 %v864
    %1145 = vmatpush2.bf16.msra.mxu0 %v863
    %1146 = vmatprep.subr.bf16.mxu0 %v862
    %1147 = vmatpush2.bf16.msra.mxu0 %v861
    %1148 = vmatprep.subr.bf16.mxu0 %v860
    %1149 = vmatpush2.bf16.msra.mxu0 %v859
    %1150 = vmatprep.subr.bf16.mxu0 %v858
    %1151 = vmatpush2.bf16.msra.mxu0 %v857
    %1152 = vmatprep.subr.bf16.mxu0 %v856
    %1153 = vmatpush2.bf16.msra.mxu0 %v855
    %1154 = vmatprep.mubr.bf16.mxu0 %v260
    %1155 = vmatmul.mubr.bf16.gmra.mxu0 %v259
    %v1156 = vpop.f32.mrf.mxu0
    %v1157 = vadd.f32 %v1114, %v1156
    %v1158 = vpop.f32.mrf.mxu0
    %v1159 = vadd.f32 %v1116, %v1158
    %v1160 = vpop.f32.mrf.mxu0
    %v1161 = vadd.f32 %v1118, %v1160
    %v1162 = vpop.f32.mrf.mxu0
    %v1163 = vadd.f32 %v1120, %v1162
    %1164 = vdwg.mxu0
    %1165 = vmatprep.subr.bf16.mxu0 %v886
    %1166 = vmatpush1.bf16.msra.mxu0 %v885
    %1167 = vmatprep.subr.bf16.mxu0 %v884
    %1168 = vmatpush1.bf16.msra.mxu0 %v883
    %1169 = vmatprep.subr.bf16.mxu0 %v882
    %1170 = vmatpush1.bf16.msra.mxu0 %v881
    %1171 = vmatprep.subr.bf16.mxu0 %v880
    %1172 = vmatpush1.bf16.msra.mxu0 %v879
    %1173 = vmatprep.subr.bf16.mxu0 %v878
    %1174 = vmatpush1.bf16.msra.mxu0 %v877
    %1175 = vmatprep.subr.bf16.mxu0 %v876
    %1176 = vmatpush1.bf16.msra.mxu0 %v875
    %1177 = vmatprep.subr.bf16.mxu0 %v874
    %1178 = vmatpush1.bf16.msra.mxu0 %v873
    %1179 = vmatprep.subr.bf16.mxu0 %v872
    %1180 = vmatpush1.bf16.msra.mxu0 %v871
    %1181 = vmatprep.subr.bf16.mxu0 0
    %1182 = vmatpush2.bf16.msra.mxu0 0
    %1183 = vmatprep.subr.bf16.mxu0 %v1034
    %1184 = vmatpush2.bf16.msra.mxu0 %v1031
    %1185 = vmatprep.subr.bf16.mxu0 %v898
    %1186 = vmatpush2.bf16.msra.mxu0 %v897
    %1187 = vmatprep.subr.bf16.mxu0 %v896
    %1188 = vmatpush2.bf16.msra.mxu0 %v895
    %1189 = vmatprep.subr.bf16.mxu0 %v894
    %1190 = vmatpush2.bf16.msra.mxu0 %v893
    %1191 = vmatprep.subr.bf16.mxu0 %v892
    %1192 = vmatpush2.bf16.msra.mxu0 %v891
    %1193 = vmatprep.subr.bf16.mxu0 %v890
    %1194 = vmatpush2.bf16.msra.mxu0 %v889
    %1195 = vmatprep.subr.bf16.mxu0 %v888
    %1196 = vmatpush2.bf16.msra.mxu0 %v887
    %1197 = vmatprep.mubr.bf16.mxu0 %v1027
    %1198 = vmatmul.mubr.bf16.gmra.mxu0 %v261
    %v1199 = vpop.f32.mrf.mxu0
    %v1200 = vadd.f32 %v1157, %v1199
    %v1201 = vpop.f32.mrf.mxu0
    %v1202 = vadd.f32 %v1159, %v1201
    %v1203 = vpop.f32.mrf.mxu0
    %v1204 = vadd.f32 %v1161, %v1203
    %v1205 = vpop.f32.mrf.mxu0
    %v1206 = vadd.f32 %v1163, %v1205
    %1207 = vdwg.mxu0
    %vm1208 = vcmp.ge.f32.partialorder %v1200, 0.0
    %vm1209 = vcmp.ge.f32.partialorder %v1202, 0.0
    %vm1210 = vcmp.ge.f32.partialorder %v1204, 0.0
    %vm1211 = vcmp.ge.f32.partialorder %v1206, 0.0
    %v1212 = vmul.f32 %v1200, 0.01
    %v1213 = vmul.f32 %v1202, 0.01
    %v1214 = vmul.f32 %v1204, 0.01
    %v1215 = vmul.f32 %v1206, 0.01
    %v1216 = vsel %vm1208, %v1200, %v1212
    %v1217 = vsel %vm1209, %v1202, %v1213
    %v1218 = vsel %vm1210, %v1204, %v1214
    %v1219 = vsel %vm1211, %v1206, %v1215
    %v1220 = vpack.c.bf16 %v1218, %v1216
    %v1221 = vpack.c.bf16 %v1219, %v1217
    %v1222 = vld [vmem:[#allocation7] sm:$0xf]
    %v1223 = vld [vmem:[#allocation7 + $0x4] sm:$0xf]
    %v1224 = vld [vmem:[#allocation7 + $0x8] sm:$0xf]
    %v1225 = vld [vmem:[#allocation7 + $0xc] sm:$0xf]
    %v1226 = vld [vmem:[#allocation7 + $0x10] sm:$0xf]
    %v1227 = vld [vmem:[#allocation7 + $0x14] sm:$0xf]
    %v1228 = vld [vmem:[#allocation7 + $0x18] sm:$0xf]
    %v1229 = vld [vmem:[#allocation7 + $0x1c] sm:$0xf]
    %v1230 = vld [vmem:[#allocation7 + $0x20] sm:$0xf]
    %v1231 = vld [vmem:[#allocation7 + $0x24] sm:$0xf]
    %v1232 = vld [vmem:[#allocation7 + $0x28] sm:$0xf]
    %v1233 = vld [vmem:[#allocation7 + $0x2c] sm:$0xf]
    %v1234 = vld [vmem:[#allocation7 + $0x30] sm:$0xf]
    %v1235 = vld [vmem:[#allocation7 + $0x34] sm:$0xf]
    %v1236 = vld [vmem:[#allocation7 + $0x38] sm:$0xf]
    %v1237 = vld [vmem:[#allocation7 + $0x3c] sm:$0xf]
    %v1238 = vld [vmem:[#allocation7 + $0x40] sm:$0xf]
    %v1239 = vld [vmem:[#allocation7 + $0x44] sm:$0xf]
    %v1240 = vld [vmem:[#allocation7 + $0x48] sm:$0xf]
    %v1241 = vld [vmem:[#allocation7 + $0x4c] sm:$0xf]
    %v1242 = vld [vmem:[#allocation7 + $0x50] sm:$0xf]
    %v1243 = vld [vmem:[#allocation7 + $0x54] sm:$0xf]
    %v1244 = vld [vmem:[#allocation7 + $0x58] sm:$0xf]
    %v1245 = vld [vmem:[#allocation7 + $0x5c] sm:$0xf]
    %v1246 = vld [vmem:[#allocation7 + $0x60] sm:$0xf]
    %v1247 = vld [vmem:[#allocation7 + $0x64] sm:$0xf]
    %v1248 = vld [vmem:[#allocation7 + $0x68] sm:$0xf]
    %v1249 = vld [vmem:[#allocation7 + $0x6c] sm:$0xf]
    %v1250 = vld [vmem:[#allocation7 + $0x70] sm:$0xf]
    %v1251 = vld [vmem:[#allocation7 + $0x74] sm:$0xf]
    %v1252 = vld [vmem:[#allocation7 + $0x78] sm:$0xf]
    %v1253 = vld [vmem:[#allocation7 + $0x7c] sm:$0xf]
    %v1254 = vld [vmem:[%s4] sm:$0x1]
    %v1256 = vlaneseq
    %v1257 = vshrl.u32 %v1256, 7
    %v1258 = vsub.s32 0, %v1257
    %v1259 = vrot.slane %v1254, %v1258
    %v1293 = vunpack.c.l.b16 %v1222
    %v1294 = vunpack.c.l.b16 %v1223
    %v1295 = vunpack.c.l.b16 %v1224
    %v1296 = vunpack.c.l.b16 %v1225
    %v1297 = vunpack.c.l.b16 %v1226
    %v1298 = vunpack.c.l.b16 %v1227
    %v1299 = vunpack.c.l.b16 %v1228
    %v1300 = vunpack.c.l.b16 %v1229
    %v1301 = vunpack.c.l.b16 %v1230
    %v1302 = vunpack.c.l.b16 %v1231
    %v1303 = vunpack.c.l.b16 %v1232
    %v1304 = vunpack.c.l.b16 %v1233
    %v1305 = vunpack.c.l.b16 %v1234
    %v1306 = vunpack.c.l.b16 %v1235
    %v1307 = vunpack.c.l.b16 %v1236
    %v1308 = vunpack.c.l.b16 %v1237
    %v1309 = vunpack.c.l.b16 %v1238
    %v1310 = vunpack.c.l.b16 %v1239
    %v1311 = vunpack.c.l.b16 %v1240
    %v1312 = vunpack.c.l.b16 %v1241
    %v1313 = vunpack.c.l.b16 %v1242
    %v1314 = vunpack.c.l.b16 %v1243
    %v1315 = vunpack.c.l.b16 %v1244
    %v1316 = vunpack.c.l.b16 %v1245
    %v1317 = vunpack.c.l.b16 %v1246
    %v1318 = vunpack.c.l.b16 %v1247
    %v1319 = vunpack.c.l.b16 %v1248
    %v1320 = vunpack.c.l.b16 %v1249
    %v1321 = vunpack.c.l.b16 %v1250
    %v1322 = vunpack.c.l.b16 %v1251
    %v1323 = vunpack.c.l.b16 %v1252
    %v1324 = vunpack.c.l.b16 %v1253
    %v1325 = vpack.c.b16 %v1294, %v1293
    %v1326 = vpack.c.b16 %v1296, %v1295
    %v1327 = vpack.c.b16 %v1298, %v1297
    %v1328 = vpack.c.b16 %v1300, %v1299
    %v1329 = vpack.c.b16 %v1302, %v1301
    %v1330 = vpack.c.b16 %v1304, %v1303
    %v1331 = vpack.c.b16 %v1306, %v1305
    %v1332 = vpack.c.b16 %v1308, %v1307
    %v1333 = vpack.c.b16 %v1310, %v1309
    %v1334 = vpack.c.b16 %v1312, %v1311
    %v1335 = vpack.c.b16 %v1314, %v1313
    %v1336 = vpack.c.b16 %v1316, %v1315
    %v1337 = vpack.c.b16 %v1318, %v1317
    %v1338 = vpack.c.b16 %v1320, %v1319
    %v1339 = vpack.c.b16 %v1322, %v1321
    %v1340 = vpack.c.b16 %v1324, %v1323
    %1357 = vmatprep.subr.bf16.mxu0 0
    %1358 = vmatpush1.bf16.msra.mxu0 %v1332
    %1359 = vmatprep.subr.bf16.mxu0 0
    %1360 = vmatpush1.bf16.msra.mxu0 %v1331
    %1361 = vmatprep.subr.bf16.mxu0 0
    %1362 = vmatpush1.bf16.msra.mxu0 %v1330
    %1363 = vmatprep.subr.bf16.mxu0 0
    %1364 = vmatpush1.bf16.msra.mxu0 %v1329
    %1365 = vmatprep.subr.bf16.mxu0 0
    %1366 = vmatpush1.bf16.msra.mxu0 %v1328
    %1367 = vmatprep.subr.bf16.mxu0 0
    %1368 = vmatpush1.bf16.msra.mxu0 %v1327
    %1369 = vmatprep.subr.bf16.mxu0 0
    %1370 = vmatpush1.bf16.msra.mxu0 %v1326
    %1371 = vmatprep.subr.bf16.mxu0 0
    %1372 = vmatpush1.bf16.msra.mxu0 %v1325
    %1373 = vmatprep.subr.bf16.mxu0 0
    %1374 = vmatpush2.bf16.msra.mxu0 %v1340
    %1375 = vmatprep.subr.bf16.mxu0 0
    %1376 = vmatpush2.bf16.msra.mxu0 %v1339
    %1377 = vmatprep.subr.bf16.mxu0 0
    %1378 = vmatpush2.bf16.msra.mxu0 %v1338
    %1379 = vmatprep.subr.bf16.mxu0 0
    %1380 = vmatpush2.bf16.msra.mxu0 %v1337
    %1381 = vmatprep.subr.bf16.mxu0 0
    %1382 = vmatpush2.bf16.msra.mxu0 %v1336
    %1383 = vmatprep.subr.bf16.mxu0 0
    %1384 = vmatpush2.bf16.msra.mxu0 %v1335
    %1385 = vmatprep.subr.bf16.mxu0 0
    %1386 = vmatpush2.bf16.msra.mxu0 %v1334
    %1387 = vmatprep.subr.bf16.mxu0 0
    %1388 = vmatpush2.bf16.msra.mxu0 %v1333
    %1389 = vmatprep.mubr.bf16.mxu0 %v1221
    %1390 = vmatmul.mubr.bf16.gmra.mxu0 %v1220
    %v1391 = vpop.f32.mrf.mxu0
    %v1392 = vadd.f32 %v1259, %v1391
    %v1393 = vpop.f32.mrf.mxu0
    %v1394 = vpop.f32.mrf.mxu0
    %v1395 = vadd.f32 %v1259, %v1394
    %v1396 = vpop.f32.mrf.mxu0
    %1397 = vdwg.mxu0
    %1398 = vst [vmem:[#allocation8] sm:$0xff] %v1392
    %1399 = vst [vmem:[#allocation8 + $0x8] sm:$0xff] %v1395
    // Predicated region
    $region34: #{tpu_custom_call.1} parent=1 // pred_check
      _
    $region35: #{tpu_custom_call.1} parent=1 // pred_check_branch
      %1401 = sbr.rel (0) target = $region37
    $region36: #{tpu_custom_call.1} parent=1 // pred_region
      %s1403 = ssub.s32 256, 32
      %1404 = vsyncadd [#allocation4], %s1403
      %s1405 = sshll.u32 [#allocation8], 4
      %s1406 = int_to_ptr.vmem [resolvable:$true] %s1405
      %1411 = dma.vmem_to_hbm [thread:$0]  %s1406, 32, %s5, [#allocation4], 32, 32, 2
    $region37: #{tpu_custom_call.1} parent=1 // pred_fallthru
      _
    // Predicated region
    $region38: #{tpu_custom_call.1} parent=1 // pred_check
      _
    $region39: #{tpu_custom_call.1} parent=1 // pred_check_branch
      %1413 = sbr.rel (0) target = $region41
    $region40: #{tpu_custom_call.1} parent=1 // pred_region
      %1414 = dma.done [#allocation4], 256
    $region41: #{tpu_custom_call.1} parent=1 // pred_fallthru
      _
    %1415 = vsyncpa [#allocation3], 1
    %1416 = vsyncpa [#allocation6], 1
    %1417 = vsyncpa [#allocation4], 1

</llo_original>
